<compile_context>
chip_gen: v7x
topology: tpu7x:2x2x1
jax: 0.10.0
libtpu: 0.0.40
codegen_flags: <defaults>
</compile_context>

<pallas_src>
import math

import jax
import jax.numpy as jnp
from jax.experimental import pallas as pl
from jax.experimental.pallas import tpu as pltpu


def make_sinusoidal_pe(max_len: int, d_model: int, dtype=jnp.float32):
    """Deterministic sinusoidal table, identical to the module's __init__ buffer."""
    if d_model % 2 != 0:
        # The PyTorch original also breaks for odd d_model (cos slice is one short).
        raise ValueError("d_model must be even for the sinusoidal encoding.")
    position = jnp.arange(max_len, dtype=jnp.float32)[:, None]           # (max_len, 1)
    div_term = jnp.exp(
        jnp.arange(0, d_model, 2, dtype=jnp.float32) * (-math.log(10000.0) / d_model)
    )                                                                     # (d_model/2,)
    pe = jnp.zeros((max_len, 1, d_model), dtype=jnp.float32)
    pe = pe.at[:, 0, 0::2].set(jnp.sin(position * div_term))
    pe = pe.at[:, 0, 1::2].set(jnp.cos(position * div_term))
    return pe.astype(dtype)


def _pe_add_kernel(x_ref, pe_ref, o_ref):
    # x_ref : (tile_s, W) VMEM tile of the lane-dense input
    # pe_ref: (1, W)      constant pe row; broadcast over the seq (sublane) axis
    o_ref[...] = x_ref[...] + pe_ref[...]


def _generation_tuning():
    """Per-TPU-generation (target_block_bytes, vmem_limit_bytes_or_None)."""
    kind = ""
    try:
        kind = jax.devices()[0].device_kind.lower()
    except Exception:  # pragma: no cover - defensive; fall back to conservative tuning
        pass
    if "v7" in kind or "tpu7" in kind:
        # 4 live double-buffers x 8 MiB = 32 MiB > the 32 MiB default scoped limit but
        # well under v7x's 64 MiB physical VMEM -> raise the scoped limit explicitly.
        return 8 << 20, 48 << 20
    if "v6" in kind:
        return 4 << 20, None          # 4 x 4 MiB = 16 MiB << 32 MiB default scoped VMEM
    # v5e (16 MiB default scoped VMEM), v5p, v4, unknown: stay conservative.
    return 2 << 20, None


def _choose_tile_s(S_rows: int, row_bytes: int, sub: int, target_block_bytes: int) -> int:
    """Seq-tile (in folded rows): ~target-sized blocks, sublane-pack aligned, prefer a tile
    that divides S_rows (no masked partial block) and an even grid-step count (v7x cores)."""
    if S_rows <= sub:
        return S_rows  # single full block (full-dim block satisfies the (8,128) rule)

    tile = max(sub, (target_block_bytes // max(row_bytes, 1)) // sub * sub)

    # Keep >= 4 grid steps when the data is big enough for pipelining / core-split to matter.
    if S_rows >= 4 * sub and S_rows * row_bytes >= (1 << 20):
        cap = max(sub, (S_rows // 4) // sub * sub)
        tile = min(tile, cap)

    if tile >= S_rows:
        return S_rows

    # Prefer a tile that divides S_rows exactly (avoid the masked partial last block);
    # search downward within a factor of 2.
    t = tile
    while t >= max(sub, tile // 2):
        if S_rows % t == 0:
            tile = t
            break
        t -= sub

    # Prefer an even number of grid steps so the "parallel" axis splits evenly across two
    # TensorCores (v7x); only adjust if we can keep exact division.
    steps = pl.cdiv(S_rows, tile)
    if steps % 2 == 1 and steps > 1:
        t = tile - sub
        while t >= max(sub, tile // 2):
            if S_rows % t == 0 and (S_rows // t) % 2 == 0:
                tile = t
                break
            t -= sub

    return tile


def positional_encoding_forward(
    x: jax.Array, pe: jax.Array, *, tile_s: int | None = None, donate_x: bool = False
):
    """x: (S, B, D) array; pe: (max_len, 1, D) buffer. Returns (S, B, D)."""
    S, B, D = x.shape
    max_len = pe.shape[0]
    if B > max_len:
        raise ValueError(
            f"batch={B} exceeds max_len={max_len}: the module slices pe[:batch] "
            "(PyTorch indexes the encoding by batch after the transpose)."
        )

    itemsize = jnp.dtype(x.dtype).itemsize
    sub = 8 * max(1, 4 // itemsize)          # sublane pack: 8 (f32) / 16 (bf16) / 32 (int8)
    width = B * D
    pe_row = pe[:B, 0, :].astype(x.dtype).reshape(-1)   # (B*D,) flattened pe[:B, 0, :]

    # ---- Lane-density: fold a factor k of the seq axis so the lane width is a 128-multiple.
    k = 1
    pad_rows = 0
    if width % 128 != 0:
        k = 128 // math.gcd(width, 128)
        pad_rows = (-S) % k
    S_pad = S + pad_rows

    x2 = x.reshape(S, width)                              # contiguous, zero-copy view
    if pad_rows:
        x2 = jnp.pad(x2, ((0, pad_rows), (0, 0)))         # only when k does not divide S
    if k > 1:
        x2 = x2.reshape(S_pad // k, k * width)
        pe_flat = jnp.tile(pe_row, k)
    else:
        pe_flat = pe_row

    S_rows = S_pad // k
    W = k * width
    pe_block = pe_flat.reshape(1, W)

    # ---- Generation-aware tiling.
    target_block_bytes, vmem_limit = _generation_tuning()
    row_bytes = W * itemsize
    if tile_s is None:
        tile_s = _choose_tile_s(S_rows, row_bytes, sub, target_block_bytes)
    tile_s = min(tile_s, S_rows)

    grid = (pl.cdiv(S_rows, tile_s),)
    # Read x once, write out once, pe row fetched once.
    bytes_accessed = 2 * S_rows * W * itemsize + W * itemsize

    cp_kwargs = dict(dimension_semantics=("parallel",))   # seq axis is independent
    if vmem_limit is not None:
        cp_kwargs["vmem_limit_bytes"] = vmem_limit

    out = pl.pallas_call(
        _pe_add_kernel,
        out_shape=jax.ShapeDtypeStruct((S_rows, W), x.dtype),
        grid_spec=pltpu.PrefetchScalarGridSpec(
            num_scalar_prefetch=0,
            grid=grid,
            in_specs=[
                pl.BlockSpec((tile_s, W), lambda i: (i, 0)),  # streamed seq tiles
                pl.BlockSpec((1, W), lambda i: (0, 0)),       # constant pe row
            ],
            out_specs=pl.BlockSpec((tile_s, W), lambda i: (i, 0)),
        ),
        compiler_params=pltpu.CompilerParams(**cp_kwargs),
        cost_estimate=pl.CostEstimate(
            flops=S_rows * W, transcendentals=0, bytes_accessed=bytes_accessed
        ),
        input_output_aliases={0: 0} if donate_x else {},
    )(x2, pe_block)

    out = out.reshape(S_pad, width)
    if pad_rows:
        out = out[:S]
    return out.reshape(S, B, D)


def _reference(x, pe):
    # Plain-JAX replica of the PyTorch forward (dropout is identity in eval).
    x_t = jnp.transpose(x, (1, 0, 2))                     # (B, S, D)
    ref = x_t + pe[: x_t.shape[0]].astype(x.dtype)        # pe[:B] (B, 1, D), broadcast over S
    return jnp.transpose(ref, (1, 0, 2))                  # (S, B, D)


if __name__ == "__main__":
    key = jax.random.PRNGKey(0)
    k1, k2, k3 = jax.random.split(key, 3)
    max_len = 128  # smaller than the module default (5000); only pe[:batch] is ever read

    # Case 1: module-consistent small shape; B*D=64 -> lane-fold path (k=2), no padding.
    S1, B1, D1 = 8, 2, 32
    x1 = jax.random.normal(k1, (S1, B1, D1), dtype=jnp.float32)
    pe1 = make_sinusoidal_pe(max_len, D1)
    out1 = jax.block_until_ready(positional_encoding_forward(x1, pe1))
    assert out1.shape == (S1, B1, D1)
    assert jnp.allclose(out1, _reference(x1, pe1), atol=1e-6), "mismatch (case 1)"

    # Case 2: odd seq length with lane-fold -> exercises the pad-and-slice path.
    S2, B2, D2 = 9, 2, 32
    x2 = jax.random.normal(k2, (S2, B2, D2), dtype=jnp.float32)
    pe2 = make_sinusoidal_pe(max_len, D2)
    out2 = jax.block_until_ready(positional_encoding_forward(x2, pe2))
    assert out2.shape == (S2, B2, D2)
    assert jnp.allclose(out2, _reference(x2, pe2), atol=1e-6), "mismatch (case 2)"

    # Case 3: larger seq with an explicit tile to exercise the multi-step pipelined grid.
    S3, B3, D3 = 512, 4, 64   # B*D=256 (already a 128-multiple, k=1)
    x3 = jax.random.normal(k3, (S3, B3, D3), dtype=jnp.float32)
    pe3 = make_sinusoidal_pe(max_len, D3)
    out3 = jax.block_until_ready(positional_encoding_forward(x3, pe3, tile_s=64))
    assert out3.shape == (S3, B3, D3)
    assert jnp.allclose(out3, _reference(x3, pe3), atol=1e-6), "mismatch (case 3)"

    print("KERNEL_OK")
</pallas_src>

<mosaic_0001>
module attributes {stable_mosaic.version = 11 : i64} {
  func.func @_pe_add_kernel(%arg0: i32, %arg1: memref<4x128xf32, #tpu.memory_space<vmem>>, %arg2: memref<1x128xf32, #tpu.memory_space<vmem>>, %arg3: memref<4x128xf32, #tpu.memory_space<vmem>>) attributes {dimension_semantics = [#tpu.dimension_semantics<parallel>], iteration_bounds = array<i64: 1>, scalar_prefetch = 0 : i64, scratch_operands = 0 : i64, tpu.core_type = #tpu.core_type<tc>, window_params = [{transform_indices = @transform_0, window_bounds = array<i64: 4, 128>}, {pipeline_mode = #tpu.pipeline_mode<synchronous>, transform_indices = @transform_1, window_bounds = array<i64: 1, 128>}, {transform_indices = @transform_2, window_bounds = array<i64: 4, 128>}]} {
    %c0 = arith.constant 0 : index
    %c0_0 = arith.constant 0 : index
    %0 = vector.load %arg1[%c0, %c0_0] : memref<4x128xf32, #tpu.memory_space<vmem>>, vector<4x128xf32>
    %c0_1 = arith.constant 0 : index
    %c0_2 = arith.constant 0 : index
    %1 = vector.load %arg2[%c0_1, %c0_2] : memref<1x128xf32, #tpu.memory_space<vmem>>, vector<1x128xf32>
    %2 = vector.broadcast %1 : vector<1x128xf32> to vector<4x128xf32>
    %3 = arith.addf %0, %2 : vector<4x128xf32>
    %c0_3 = arith.constant 0 : index
    %c0_4 = arith.constant 0 : index
    %4 = vector.load %arg3[%c0_3, %c0_4] : memref<4x128xf32, #tpu.memory_space<vmem>>, vector<4x128xf32>
    tpu.vector_store %arg3[%c0_3, %c0_4], %3 {strides = array<i32>} : memref<4x128xf32, #tpu.memory_space<vmem>>, vector<4x128xf32>,
    return
  }
  func.func @transform_0(%arg0: i32) -> (i32, i32) {
    %c0_i32 = arith.constant 0 : i32
    %c0_i32_0 = arith.constant 0 : i32
    return %arg0, %c0_i32 : i32, i32
  }
  func.func @transform_1(%arg0: i32) -> (i32, i32) {
    %c0_i32 = arith.constant 0 : i32
    %c0_i32_0 = arith.constant 0 : i32
    %c0_i32_1 = arith.constant 0 : i32
    return %c0_i32, %c0_i32_0 : i32, i32
  }
  func.func @transform_2(%arg0: i32) -> (i32, i32) {
    %c0_i32 = arith.constant 0 : i32
    %c0_i32_0 = arith.constant 0 : i32
    return %arg0, %c0_i32 : i32, i32
  }
}

</mosaic_0001>

<llo_original>
// kernel: tpu_custom_call.1
$region0: #{tpu_custom_call.1}
  #allocation0 [shape = 'u32[]', space=smem, size = 0x4, offset = 0x4, fixed_abs, tag = 'smem constant byte address 0x4 - core index']
  #allocation1 [shape = 'u32[144,128]{1,0:T(1,128)}', space=vmem, size = 0x12000, scoped, tag = 'internal scratch']
  %s0 = inlined_call_operand.hbm [shape: f32[4,128], index: 0, kind: input, shape index: {}]
  %s1 = inlined_call_operand.vmem [shape: f32[1,128], index: 1, kind: input, shape index: {}]
  %s2 = inlined_call_operand.hbm [shape: f32[4,128], index: 2, kind: output, shape index: {}]
  %s3 = sld [smem:[#allocation0]]
  $region22: #{tpu_custom_call.1} parent=0
    _
  %s5 = ssub.s32 1, %s3
  %s6 = scalar_select 0, %s5, %s3
  $region1: #{tpu_custom_call.1} parent=0
    #allocation2 [shape = 'u8[2048]{0}', space=vmem, size = 0x800, scoped, tag = 'input window, operand 0, single buffered']
    #allocation3 [shape = 's32[1]{0}', space=sflag, size = 0x4, scoped, tag = 'scoped memory for tpu_custom_call.1']
    #allocation4 [shape = 's32[1]{0}', space=sflag, size = 0x4, scoped, tag = 'scoped memory for tpu_custom_call.1']
    #allocation5 [shape = 'u8[2048]{0}', space=vmem, size = 0x800, scoped, tag = 'output window, operand 0, single buffered']
    %7 = vsyncpa [#allocation3], 0
    %8 = vsyncpa [#allocation4], 0
    // Predicated region
    $region2: #{tpu_custom_call.1} parent=1 // pred_check
      _
    $region3: #{tpu_custom_call.1} parent=1 // pred_check_branch
      %10 = sbr.rel (0) target = $region5
    $region4: #{tpu_custom_call.1} parent=1 // pred_region
      %s12 = ssub.s32 64, 64
      %13 = vsyncadd [#allocation3], %s12
      %s15 = sshll.u32 [#allocation2], 4
      %s16 = int_to_ptr.vmem [resolvable:$true] %s15
      %18 = dma.hbm_to_vmem [thread:$0]  %s0, 64, %s16, [#allocation3]
    $region5: #{tpu_custom_call.1} parent=1 // pred_fallthru
      _
    // Predicated region
    $region6: #{tpu_custom_call.1} parent=1 // pred_check
      _
    $region7: #{tpu_custom_call.1} parent=1 // pred_check_branch
      %20 = sbr.rel (0) target = $region9
    $region8: #{tpu_custom_call.1} parent=1 // pred_region
      _
    $region9: #{tpu_custom_call.1} parent=1 // pred_fallthru
      _
    // Predicated region
    $region10: #{tpu_custom_call.1} parent=1 // pred_check
      _
    $region11: #{tpu_custom_call.1} parent=1 // pred_check_branch
      %22 = sbr.rel (0) target = $region13
    $region12: #{tpu_custom_call.1} parent=1 // pred_region
      %23 = dma.done [#allocation3], 64
    $region13: #{tpu_custom_call.1} parent=1 // pred_fallthru
      _
    %v24 = vld [vmem:[#allocation2] sm:$0xf]
    %v25 = vld [vmem:[%s1] sm:$0x1]
    %v27 = vlaneseq
    %v28 = vshrl.u32 %v27, 7
    %v29 = vsub.s32 0, %v28
    %v30 = vrot.slane %v25, %v29
    %v32 = vadd.f32 %v24, %v30
    %33 = vst [vmem:[#allocation5] sm:$0xf] %v32
    // Predicated region
    $region14: #{tpu_custom_call.1} parent=1 // pred_check
      _
    $region15: #{tpu_custom_call.1} parent=1 // pred_check_branch
      %35 = sbr.rel (0) target = $region17
    $region16: #{tpu_custom_call.1} parent=1 // pred_region
      %s37 = ssub.s32 64, 64
      %38 = vsyncadd [#allocation4], %s37
      %s40 = sshll.u32 [#allocation5], 4
      %s41 = int_to_ptr.vmem [resolvable:$true] %s40
      %43 = dma.vmem_to_hbm [thread:$0]  %s41, 64, %s2, [#allocation4]
    $region17: #{tpu_custom_call.1} parent=1 // pred_fallthru
      _
    // Predicated region
    $region18: #{tpu_custom_call.1} parent=1 // pred_check
      _
    $region19: #{tpu_custom_call.1} parent=1 // pred_check_branch
      %45 = sbr.rel (0) target = $region21
    $region20: #{tpu_custom_call.1} parent=1 // pred_region
      %46 = dma.done [#allocation4], 64
    $region21: #{tpu_custom_call.1} parent=1 // pred_fallthru
      _
    %47 = vsyncpa [#allocation3], 1
    %48 = vsyncpa [#allocation4], 1

</llo_original>
